<compile_context>
chip_gen: v7x
topology: tpu7x:2x2x1
jax: 0.10.0
libtpu: 0.0.40
codegen_flags: <defaults>
</compile_context>

<pallas_src>
import jax
import jax.numpy as jnp
from jax import lax
from jax.experimental import pallas as pl
from jax.experimental.pallas import tpu as pltpu


def _cdiv(a, b):
    return -(-a // b)


def association_kernel(xh_ref, w1_ref, b1_ref, w2_ref, b2_ref,
                       ht_ref, pooled_ref, idx_ref):
    rows, _ = xh_ref.shape              # rows = Bt * N
    bt, cout = pooled_ref.shape
    n = rows // bt

    # Fused 1x1 conv over concat([x, h], channel):  xh @ [Wx; Wh] + b1   (single MXU matmul)
    xh = xh_ref[...]                                                     # (rows, Kpad) bf16
    pre = jnp.dot(xh, w1_ref[...],
                  preferred_element_type=jnp.float32) + b1_ref[...]
    hid = jnp.tanh(pre)                                                  # (rows, Cout) f32

    # Second 1x1 conv -> task_hidden (per-node hidden handed to children)
    task = jnp.tanh(jnp.dot(hid.astype(w2_ref.dtype), w2_ref[...],
                            preferred_element_type=jnp.float32) + b2_ref[...])

    # Lane-dense writeback: store [hid; task] transposed as (2*Cout, rows) bf16 so the
    # store lane width is rows (>=128) instead of Cout (=32). Wrapper transposes back.
    ht_ref[:cout, :] = hid.T.astype(ht_ref.dtype)
    ht_ref[cout:, :] = task.T.astype(ht_ref.dtype)

    # F.max_pool2d(hidden.unsqueeze(1), kernel_size=(node_count, 1), return_indices=True):
    # max over the node axis per batch; indices are flat offsets into the (node, hidden)
    # spatial map (row * Cout + col), first-occurrence argmax like PyTorch.
    hid_b = hid.reshape(bt, n, cout)                                     # f32
    pooled = jnp.max(hid_b, axis=1, keepdims=True)                       # (bt, 1, cout)
    row_iota = lax.broadcasted_iota(jnp.int32, (bt, n, cout), 1)
    # NOTE: float-equality first-argmax is fine for values from the same computation,
    # but diverges from torch if hid contains NaN.
    win_row = jnp.min(jnp.where(hid_b == pooled, row_iota, n), axis=1)   # (bt, cout)
    col_iota = lax.broadcasted_iota(jnp.int32, (bt, cout), 1)

    pooled_ref[...] = pooled[:, 0, :]
    idx_ref[...] = win_row * cout + col_iota                             # PyTorch flat index


def _choose_bt(B, N, target_rows=512):
    """Batches per grid step: big matmul rows, but keep >=2 steps for v7x megacore."""
    bt = max(1, min(B, max(1, target_rows // max(N, 1))))
    while bt > 1 and _cdiv(B, bt) < 2:
        bt = (bt + 1) // 2
    return bt


def association_layer_forward(x, h, params, *, bt=None):
    """x: (B, N, Cin) node features; h: (B, N, Chid) node hidden states."""
    B, N, Cin = x.shape
    Chid = h.shape[-1]
    Cout = params["wx"].shape[-1]

    if bt is None:
        bt = _choose_bt(B, N)
    G = _cdiv(B, bt)
    B_pad = G * bt
    rows = bt * N

    # Fuse the two input matmuls: concat channels of x/h and stack Wx over Wh; pad K to 8.
    K = Cin + Chid
    Kpad = _cdiv(K, 8) * 8
    xh = jnp.concatenate([x, h], axis=-1)
    if B_pad != B:
        xh = jnp.pad(xh, ((0, B_pad - B), (0, 0), (0, 0)))
    if Kpad != K:
        xh = jnp.pad(xh, ((0, 0), (0, 0), (0, Kpad - K)))
    xh = xh.reshape(B_pad * N, Kpad).astype(jnp.bfloat16)

    w1 = jnp.concatenate([params["wx"], params["wh"]], axis=0)
    if Kpad != K:
        w1 = jnp.pad(w1, ((0, Kpad - K), (0, 0)))
    w1 = w1.astype(jnp.bfloat16)
    b1 = params["b1"].astype(jnp.float32)
    w2 = params["w2"].astype(jnp.bfloat16)
    b2 = params["b2"].astype(jnp.float32)

    out_shapes = (
        jax.ShapeDtypeStruct((2 * Cout, B_pad * N), jnp.bfloat16),  # [hid; task] transposed
        jax.ShapeDtypeStruct((B_pad, Cout), jnp.float32),           # pooled hidden (module output)
        jax.ShapeDtypeStruct((B_pad, Cout), jnp.int32),             # max-pool indices
    )

    const2d = lambda shape: pl.BlockSpec(shape, lambda g: (0, 0))
    ht_t, pooled, idx = pl.pallas_call(
        association_kernel,
        out_shape=out_shapes,
        grid_spec=pltpu.PrefetchScalarGridSpec(
            num_scalar_prefetch=0,
            grid=(G,),
            in_specs=[
                pl.BlockSpec((rows, Kpad), lambda g: (g, 0)),   # activations stream
                const2d((Kpad, Cout)),                          # resident weights
                const2d((1, Cout)),
                const2d((Cout, Cout)),
                const2d((1, Cout)),
            ],
            out_specs=[
                pl.BlockSpec((2 * Cout, rows), lambda g: (0, g)),
                pl.BlockSpec((bt, Cout), lambda g: (g, 0)),
                pl.BlockSpec((bt, Cout), lambda g: (g, 0)),
            ],
        ),
        compiler_params=pltpu.CompilerParams(
            dimension_semantics=("parallel",)),
    )(xh, w1, b1, w2, b2)

    # Wrapper-side layout plumbing back to the module's shapes/dtypes.
    hidden_all = ht_t[:Cout].T.reshape(B_pad, N, Cout)[:B].astype(jnp.float32)
    task_hidden = ht_t[Cout:].T.reshape(B_pad, N, Cout)[:B].astype(jnp.float32)
    pooled = pooled[:B, None, :]            # (B, 1, Cout): max_pool2d(...).squeeze(1)
    indices = idx[:B, None, None, :]        # (B, 1, 1, Cout); int32 vs PyTorch's int64
    # TODO(synk): batch_tree.set('h'/'indices') and per-child scatter of task_hidden.split(1, dim=1)
    # are Python tree bookkeeping with no Pallas equivalent.
    return pooled, indices, task_hidden, hidden_all


def _reference(x, h, params):
    # Reference uses the same bf16 input/weight casts, f32 accumulation and f32 math.
    xb, hb = x.astype(jnp.bfloat16), h.astype(jnp.bfloat16)
    wx, wh = params["wx"].astype(jnp.bfloat16), params["wh"].astype(jnp.bfloat16)
    w2 = params["w2"].astype(jnp.bfloat16)
    pre = (jnp.einsum("bnc,co->bno", xb, wx, preferred_element_type=jnp.float32)
           + jnp.einsum("bnc,co->bno", hb, wh, preferred_element_type=jnp.float32)
           + params["b1"][0])
    hid = jnp.tanh(pre)
    task = jnp.tanh(jnp.einsum("bno,op->bnp", hid.astype(jnp.bfloat16), w2,
                               preferred_element_type=jnp.float32) + params["b2"][0])
    pooled = jnp.max(hid, axis=1, keepdims=True)
    win = jnp.argmax(hid, axis=1)                       # (B, Cout), first occurrence
    idx = win * hid.shape[-1] + jnp.arange(hid.shape[-1])
    return pooled, idx[:, None, None, :].astype(jnp.int32), task, hid


if __name__ == "__main__":
    # N = node_count, Cout = hidden dim. B large enough to exercise batched grid steps.
    B, N, Cin, Chid, Cout = 32, 8, 4, 32, 32

    key = jax.random.PRNGKey(0)
    kx, kh, k1, k2, k3, k4, k5 = jax.random.split(key, 7)
    x_1 = jax.random.normal(kx, (B, N, Cin), dtype=jnp.float32)
    h_1 = jax.random.normal(kh, (B, N, Chid), dtype=jnp.float32)
    params = {
        "wx": jax.random.normal(k1, (Cin, Cout), dtype=jnp.float32) * 0.2,
        "wh": jax.random.normal(k2, (Chid, Cout), dtype=jnp.float32) * 0.2,
        "b1": jax.random.normal(k3, (1, Cout), dtype=jnp.float32) * 0.05,
        "w2": jax.random.normal(k4, (Cout, Cout), dtype=jnp.float32) * 0.2,
        "b2": jax.random.normal(k5, (1, Cout), dtype=jnp.float32) * 0.05,
    }

    pooled, indices, task_hidden, hidden_all = jax.block_until_ready(
        association_layer_forward(x_1, h_1, params))

    r_pooled, r_idx, r_task, r_hid = _reference(x_1, h_1, params)
    assert pooled.shape == (B, 1, Cout) and indices.shape == (B, 1, 1, Cout)
    assert jnp.allclose(pooled, r_pooled, atol=1e-4), "pooled mismatch"
    assert jnp.allclose(hidden_all, r_hid, atol=1e-2), "hidden mismatch"        # bf16 writeback
    assert jnp.allclose(task_hidden, r_task, atol=1e-2), "task_hidden mismatch"  # bf16 writeback
    assert jnp.array_equal(indices, r_idx), "indices mismatch"

    print("KERNEL_OK")
</pallas_src>

<mosaic_0001>
module attributes {stable_mosaic.version = 11 : i64} {
  func.func @association_kernel(%arg0: i32, %arg1: memref<128x40xbf16, #tpu.memory_space<vmem>>, %arg2: memref<40x32xbf16, #tpu.memory_space<vmem>>, %arg3: memref<1x32xf32, #tpu.memory_space<vmem>>, %arg4: memref<32x32xbf16, #tpu.memory_space<vmem>>, %arg5: memref<1x32xf32, #tpu.memory_space<vmem>>, %arg6: memref<64x128xbf16, #tpu.memory_space<vmem>>, %arg7: memref<16x32xf32, #tpu.memory_space<vmem>>, %arg8: memref<16x32xi32, #tpu.memory_space<vmem>>) attributes {dimension_semantics = [#tpu.dimension_semantics<parallel>], iteration_bounds = array<i64: 2>, scalar_prefetch = 0 : i64, scratch_operands = 0 : i64, tpu.core_type = #tpu.core_type<tc>, window_params = [{transform_indices = @transform_0, window_bounds = array<i64: 128, 40>}, {pipeline_mode = #tpu.pipeline_mode<synchronous>, transform_indices = @transform_1, window_bounds = array<i64: 40, 32>}, {pipeline_mode = #tpu.pipeline_mode<synchronous>, transform_indices = @transform_2, window_bounds = array<i64: 1, 32>}, {pipeline_mode = #tpu.pipeline_mode<synchronous>, transform_indices = @transform_3, window_bounds = array<i64: 32, 32>}, {pipeline_mode = #tpu.pipeline_mode<synchronous>, transform_indices = @transform_4, window_bounds = array<i64: 1, 32>}, {transform_indices = @transform_5, window_bounds = array<i64: 64, 128>}, {transform_indices = @transform_6, window_bounds = array<i64: 16, 32>}, {transform_indices = @transform_7, window_bounds = array<i64: 16, 32>}]} {
    %c0 = arith.constant 0 : index
    %c0_0 = arith.constant 0 : index
    %0 = vector.load %arg1[%c0, %c0_0] : memref<128x40xbf16, #tpu.memory_space<vmem>>, vector<128x40xbf16>
    %c0_1 = arith.constant 0 : index
    %c0_2 = arith.constant 0 : index
    %1 = vector.load %arg2[%c0_1, %c0_2] : memref<40x32xbf16, #tpu.memory_space<vmem>>, vector<40x32xbf16>
    %cst = arith.constant dense<0.000000e+00> : vector<128x32xf32>
    %2 = tpu.matmul %0, %1, %cst {dimension_numbers = #tpu.dot_dimension_numbers<[1], [0], [0], [1], [0, 0, 1, 1], [], []>} : vector<128x40xbf16>, vector<40x32xbf16>, vector<128x32xf32> -> vector<128x32xf32>
    %c0_3 = arith.constant 0 : index
    %c0_4 = arith.constant 0 : index
    %3 = vector.load %arg3[%c0_3, %c0_4] : memref<1x32xf32, #tpu.memory_space<vmem>>, vector<1x32xf32>
    %4 = vector.broadcast %3 : vector<1x32xf32> to vector<128x32xf32>
    %5 = arith.addf %2, %4 : vector<128x32xf32>
    %6 = math.tanh %5 : vector<128x32xf32>
    %7 = arith.truncf %6 : vector<128x32xf32> to vector<128x32xbf16>
    %c0_5 = arith.constant 0 : index
    %c0_6 = arith.constant 0 : index
    %8 = vector.load %arg4[%c0_5, %c0_6] : memref<32x32xbf16, #tpu.memory_space<vmem>>, vector<32x32xbf16>
    %cst_7 = arith.constant dense<0.000000e+00> : vector<128x32xf32>
    %9 = tpu.matmul %7, %8, %cst_7 {dimension_numbers = #tpu.dot_dimension_numbers<[1], [0], [0], [1], [0, 0, 1, 1], [], []>} : vector<128x32xbf16>, vector<32x32xbf16>, vector<128x32xf32> -> vector<128x32xf32>
    %c0_8 = arith.constant 0 : index
    %c0_9 = arith.constant 0 : index
    %10 = vector.load %arg5[%c0_8, %c0_9] : memref<1x32xf32, #tpu.memory_space<vmem>>, vector<1x32xf32>
    %11 = vector.broadcast %10 : vector<1x32xf32> to vector<128x32xf32>
    %12 = arith.addf %9, %11 : vector<128x32xf32>
    %13 = math.tanh %12 : vector<128x32xf32>
    %14 = tpu.transpose %6, [1, 0] : vector<128x32xf32> -> vector<32x128xf32>
    %15 = arith.truncf %14 : vector<32x128xf32> to vector<32x128xbf16>
    %c0_10 = arith.constant 0 : index
    %c0_11 = arith.constant 0 : index
    %16 = vector.load %arg6[%c0_10, %c0_11] : memref<64x128xbf16, #tpu.memory_space<vmem>>, vector<32x128xbf16>
    tpu.vector_store %arg6[%c0_10, %c0_11], %15 {strides = array<i32>} : memref<64x128xbf16, #tpu.memory_space<vmem>>, vector<32x128xbf16>,
    %17 = tpu.transpose %13, [1, 0] : vector<128x32xf32> -> vector<32x128xf32>
    %18 = arith.truncf %17 : vector<32x128xf32> to vector<32x128xbf16>
    %c32 = arith.constant 32 : index
    %c0_12 = arith.constant 0 : index
    %19 = vector.load %arg6[%c32, %c0_12] : memref<64x128xbf16, #tpu.memory_space<vmem>>, vector<32x128xbf16>
    tpu.vector_store %arg6[%c32, %c0_12], %18 {strides = array<i32>} : memref<64x128xbf16, #tpu.memory_space<vmem>>, vector<32x128xbf16>,
    %20 = vector.shape_cast %6 : vector<128x32xf32> to vector<16x8x32xf32>
    %cst_13 = arith.constant dense<0xFF800000> : vector<16x32xf32>
    %21 = vector.multi_reduction <maximumf>, %20, %cst_13 [1] : vector<16x8x32xf32> to vector<16x32xf32>
    %22 = vector.shape_cast %21 : vector<16x32xf32> to vector<16x1x32xf32>
    %23 = tpu.iota {dimensions = array<i32: 1>} : vector<16x8x32xi32>
    %24 = vector.broadcast %22 : vector<16x1x32xf32> to vector<16x8x32xf32>
    %25 = arith.cmpf oeq, %20, %24 : vector<16x8x32xf32>
    %c8_i32 = arith.constant 8 : i32
    %26 = vector.broadcast %c8_i32 : i32 to vector<16x8x32xi32>
    %27 = arith.select %25, %23, %26 : vector<16x8x32xi1>, vector<16x8x32xi32>
    %cst_14 = arith.constant dense<2147483647> : vector<16x32xi32>
    %28 = vector.multi_reduction <minsi>, %27, %cst_14 [1] : vector<16x8x32xi32> to vector<16x32xi32>
    %29 = tpu.iota {dimensions = array<i32: 1>} : vector<16x32xi32>
    %30 = vector.shape_cast %22 : vector<16x1x32xf32> to vector<16x32xf32>
    %c0_15 = arith.constant 0 : index
    %c0_16 = arith.constant 0 : index
    %31 = vector.load %arg7[%c0_15, %c0_16] : memref<16x32xf32, #tpu.memory_space<vmem>>, vector<16x32xf32>
    tpu.vector_store %arg7[%c0_15, %c0_16], %30 {strides = array<i32>} : memref<16x32xf32, #tpu.memory_space<vmem>>, vector<16x32xf32>,
    %c32_i32 = arith.constant 32 : i32
    %32 = vector.broadcast %c32_i32 : i32 to vector<16x32xi32>
    %33 = arith.muli %28, %32 : vector<16x32xi32>
    %34 = arith.addi %33, %29 : vector<16x32xi32>
    %c0_17 = arith.constant 0 : index
    %c0_18 = arith.constant 0 : index
    %35 = vector.load %arg8[%c0_17, %c0_18] : memref<16x32xi32, #tpu.memory_space<vmem>>, vector<16x32xi32>
    tpu.vector_store %arg8[%c0_17, %c0_18], %34 {strides = array<i32>} : memref<16x32xi32, #tpu.memory_space<vmem>>, vector<16x32xi32>,
    return
  }
  func.func @transform_0(%arg0: i32) -> (i32, i32) {
    %c0_i32 = arith.constant 0 : i32
    %c0_i32_0 = arith.constant 0 : i32
    return %arg0, %c0_i32 : i32, i32
  }
  func.func @transform_1(%arg0: i32) -> (i32, i32) {
    %c0_i32 = arith.constant 0 : i32
    %c0_i32_0 = arith.constant 0 : i32
    %c0_i32_1 = arith.constant 0 : i32
    return %c0_i32, %c0_i32_0 : i32, i32
  }
  func.func @transform_2(%arg0: i32) -> (i32, i32) {
    %c0_i32 = arith.constant 0 : i32
    %c0_i32_0 = arith.constant 0 : i32
    %c0_i32_1 = arith.constant 0 : i32
    return %c0_i32, %c0_i32_0 : i32, i32
  }
  func.func @transform_3(%arg0: i32) -> (i32, i32) {
    %c0_i32 = arith.constant 0 : i32
    %c0_i32_0 = arith.constant 0 : i32
    %c0_i32_1 = arith.constant 0 : i32
    return %c0_i32, %c0_i32_0 : i32, i32
  }
  func.func @transform_4(%arg0: i32) -> (i32, i32) {
    %c0_i32 = arith.constant 0 : i32
    %c0_i32_0 = arith.constant 0 : i32
    %c0_i32_1 = arith.constant 0 : i32
    return %c0_i32, %c0_i32_0 : i32, i32
  }
  func.func @transform_5(%arg0: i32) -> (i32, i32) {
    %c0_i32 = arith.constant 0 : i32
    %c0_i32_0 = arith.constant 0 : i32
    return %c0_i32, %arg0 : i32, i32
  }
  func.func @transform_6(%arg0: i32) -> (i32, i32) {
    %c0_i32 = arith.constant 0 : i32
    %c0_i32_0 = arith.constant 0 : i32
    return %arg0, %c0_i32 : i32, i32
  }
  func.func @transform_7(%arg0: i32) -> (i32, i32) {
    %c0_i32 = arith.constant 0 : i32
    %c0_i32_0 = arith.constant 0 : i32
    return %arg0, %c0_i32 : i32, i32
  }
}

</mosaic_0001>

<llo_original>
// kernel: tpu_custom_call.1
$region0: #{tpu_custom_call.1}
  #allocation0 [shape = 'u32[]', space=smem, size = 0x4, offset = 0x4, fixed_abs, tag = 'smem constant byte address 0x4 - core index']
  #allocation1 [shape = 'u32[144,128]{1,0:T(1,128)}', space=vmem, size = 0x12000, scoped, tag = 'internal scratch']
  %s0 = inlined_call_operand.vmem [shape: bf16[256,40], index: 0, kind: input, shape index: {}]
  %s1 = inlined_call_operand.vmem [shape: bf16[40,32], index: 1, kind: input, shape index: {}]
  %s2 = inlined_call_operand.vmem [shape: f32[1,32], index: 2, kind: input, shape index: {}]
  %s3 = inlined_call_operand.vmem [shape: bf16[32,32], index: 3, kind: input, shape index: {}]
  %s4 = inlined_call_operand.vmem [shape: f32[1,32], index: 4, kind: input, shape index: {}]
  %s5 = inlined_call_operand.hbm [shape: bf16[64,256], index: 5, kind: output, shape index: {0}]
  %s6 = inlined_call_operand.hbm [shape: f32[32,32], index: 6, kind: output, shape index: {1}]
  %s7 = inlined_call_operand.hbm [shape: s32[32,32], index: 7, kind: output, shape index: {2}]
  %8 = xla_tuple %s5, %s6, %s7
  %s9 = sld [smem:[#allocation0]]
  $region69: #{tpu_custom_call.1} parent=0
    _
  %s11 = ssub.s32 1, %s9
  %s12 = scalar_select 0, %s11, %s9
  $region1: #{tpu_custom_call.1} parent=0
    #allocation2 [shape = 'u8[32768]{0}', space=vmem, size = 0x8000, scoped, tag = 'output window, operand 0']
    #allocation3 [shape = 's32[2]{0}', space=sflag, size = 0x8, scoped, tag = 'scoped memory for tpu_custom_call.1']
    #allocation4 [shape = 'u8[16384]{0}', space=vmem, size = 0x4000, scoped, tag = 'output window, operand 1']
    #allocation5 [shape = 's32[2]{0}', space=sflag, size = 0x8, scoped, tag = 'scoped memory for tpu_custom_call.1']
    #allocation6 [shape = 'u8[16384]{0}', space=vmem, size = 0x4000, scoped, tag = 'output window, operand 2']
    %13 = vsyncpa [#allocation3], 0
    %s14 = scalar_lea.sflag [#allocation3], 1
    %15 = vsyncpa %s14, 0
    %16 = vsyncpa [#allocation5], 0
    %s17 = scalar_lea.sflag [#allocation5], 1
    %18 = vsyncpa %s17, 0
    loop: start=0, step=1, limit=4
    $region2: #{tpu_custom_call.1} parent=1 // loop_pre_header
      _
    $region3: #{tpu_custom_call.1} parent=1 // loop_header
      %s20 = sphi 0, %s24
      %p21 = scmp.ge.s32.totalorder %s20, 4
      %s30 = sphi 0, %s32
      %s33 = sphi 0, %s30
      %s34 = sphi 0, %s33
      %s50 = sphi 0, %s34
      %s54 = sphi 0, %s54
      %s56 = sphi 0, %s54
      %s57 = sphi 0, %s56
      %s71 = sphi 0, %s57
      %s75 = sphi 0, %s75
      %s77 = sphi 0, %s75
      %s78 = sphi 0, %s77
      %s92 = sphi 0, %s78
      %s96 = sphi 0, %s96
      %s98 = sphi 0, %s96
      %s99 = sphi 0, %s98
      %s113 = sphi 0, %s99
      %s117 = sphi 0, %s117
      %s119 = sphi 0, %s117
      %s120 = sphi 0, %s119
      %s134 = sphi 0, %s120
      %s140 = sphi 0, %s142
      %s143 = sphi 0, %s140
      %s144 = sphi 0, %s143
      %s160 = sphi 0, %s144
      %s166 = sphi 0, %s168
      %s169 = sphi 0, %s166
      %s170 = sphi 0, %s169
      %s186 = sphi 0, %s170
      %s192 = sphi 0, %s194
      %s195 = sphi 0, %s192
      %s196 = sphi 0, %s195
      %s212 = sphi 0, %s196
    $region4: #{tpu_custom_call.1} parent=1 // loop_header_branch
      %23 = sbr.rel (%p21) target = $region8
    $region5: #{tpu_custom_call.1} parent=1 // loop_body
      %s25 = ssub.s32 %s20, 1
      %s26 = ssub.s32 %s20, 2
      %s27 = sadd.s32 %s20, 1
      %s28 = ssub.s32 %s20, %s27
      %p29 = scmp.eq.s32.totalorder %s28, 0
      %s31 = sadd.s32 %s30, 1
      %s32 = scalar_select %p29, %s30, %s31
      %p35 = pneg %p29
      %p36 = scmp.eq.s32.totalorder %s20, 1
      %p37 = por %p35, %p36
      %p38 = scmp.ne.s32.totalorder %s30, %s33
      %p39 = scmp.eq.s32.totalorder %s20, 0
      %p40 = por %p38, %p39
      %p41 = scmp.ne.s32.totalorder %s30, %s33
      %p42 = scmp.eq.s32.totalorder %s25, 1
      %p43 = por %p41, %p42
      %p44 = scmp.ne.s32.totalorder %s33, %s34
      %p45 = scmp.eq.s32.totalorder %s25, 0
      %p46 = por %p44, %p45
      %p47 = scmp.ne.s32.totalorder %s33, %s34
      %p48 = scmp.eq.s32.totalorder %s26, 1
      %p49 = por %p47, %p48
      %p51 = scmp.ne.s32.totalorder %s34, %s50
      %p52 = scmp.eq.s32.totalorder %s26, 0
      %p53 = por %p51, %p52
      %s55 = sadd.s32 %s54, 1
      %p58 = scmp.eq.s32.totalorder %s20, 1
      %p59 = scmp.ne.s32.totalorder %s54, %s56
      %p60 = scmp.eq.s32.totalorder %s20, 0
      %p61 = por %p59, %p60
      %p62 = scmp.ne.s32.totalorder %s54, %s56
      %p63 = scmp.eq.s32.totalorder %s25, 1
      %p64 = por %p62, %p63
      %p65 = scmp.ne.s32.totalorder %s56, %s57
      %p66 = scmp.eq.s32.totalorder %s25, 0
      %p67 = por %p65, %p66
      %p68 = scmp.ne.s32.totalorder %s56, %s57
      %p69 = scmp.eq.s32.totalorder %s26, 1
      %p70 = por %p68, %p69
      %p72 = scmp.ne.s32.totalorder %s57, %s71
      %p73 = scmp.eq.s32.totalorder %s26, 0
      %p74 = por %p72, %p73
      %s76 = sadd.s32 %s75, 1
      %p79 = scmp.eq.s32.totalorder %s20, 1
      %p80 = scmp.ne.s32.totalorder %s75, %s77
      %p81 = scmp.eq.s32.totalorder %s20, 0
      %p82 = por %p80, %p81
      %p83 = scmp.ne.s32.totalorder %s75, %s77
      %p84 = scmp.eq.s32.totalorder %s25, 1
      %p85 = por %p83, %p84
      %p86 = scmp.ne.s32.totalorder %s77, %s78
      %p87 = scmp.eq.s32.totalorder %s25, 0
      %p88 = por %p86, %p87
      %p89 = scmp.ne.s32.totalorder %s77, %s78
      %p90 = scmp.eq.s32.totalorder %s26, 1
      %p91 = por %p89, %p90
      %p93 = scmp.ne.s32.totalorder %s78, %s92
      %p94 = scmp.eq.s32.totalorder %s26, 0
      %p95 = por %p93, %p94
      %s97 = sadd.s32 %s96, 1
      %p100 = scmp.eq.s32.totalorder %s20, 1
      %p101 = scmp.ne.s32.totalorder %s96, %s98
      %p102 = scmp.eq.s32.totalorder %s20, 0
      %p103 = por %p101, %p102
      %p104 = scmp.ne.s32.totalorder %s96, %s98
      %p105 = scmp.eq.s32.totalorder %s25, 1
      %p106 = por %p104, %p105
      %p107 = scmp.ne.s32.totalorder %s98, %s99
      %p108 = scmp.eq.s32.totalorder %s25, 0
      %p109 = por %p107, %p108
      %p110 = scmp.ne.s32.totalorder %s98, %s99
      %p111 = scmp.eq.s32.totalorder %s26, 1
      %p112 = por %p110, %p111
      %p114 = scmp.ne.s32.totalorder %s99, %s113
      %p115 = scmp.eq.s32.totalorder %s26, 0
      %p116 = por %p114, %p115
      %s118 = sadd.s32 %s117, 1
      %p121 = scmp.eq.s32.totalorder %s20, 1
      %p122 = scmp.ne.s32.totalorder %s117, %s119
      %p123 = scmp.eq.s32.totalorder %s20, 0
      %p124 = por %p122, %p123
      %p125 = scmp.ne.s32.totalorder %s117, %s119
      %p126 = scmp.eq.s32.totalorder %s25, 1
      %p127 = por %p125, %p126
      %p128 = scmp.ne.s32.totalorder %s119, %s120
      %p129 = scmp.eq.s32.totalorder %s25, 0
      %p130 = por %p128, %p129
      %p131 = scmp.ne.s32.totalorder %s119, %s120
      %p132 = scmp.eq.s32.totalorder %s26, 1
      %p133 = por %p131, %p132
      %p135 = scmp.ne.s32.totalorder %s120, %s134
      %p136 = scmp.eq.s32.totalorder %s26, 0
      %p137 = por %p135, %p136
      %s138 = ssub.s32 %s20, %s27
      %p139 = scmp.eq.s32.totalorder %s138, 0
      %s141 = sadd.s32 %s140, 1
      %s142 = scalar_select %p139, %s140, %s141
      %p145 = pneg %p139
      %p146 = scmp.eq.s32.totalorder %s20, 1
      %p147 = por %p145, %p146
      %p148 = scmp.ne.s32.totalorder %s140, %s143
      %p149 = scmp.eq.s32.totalorder %s20, 0
      %p150 = por %p148, %p149
      %p151 = scmp.ne.s32.totalorder %s140, %s143
      %p152 = scmp.eq.s32.totalorder %s25, 1
      %p153 = por %p151, %p152
      %p154 = scmp.ne.s32.totalorder %s143, %s144
      %p155 = scmp.eq.s32.totalorder %s25, 0
      %p156 = por %p154, %p155
      %p157 = scmp.ne.s32.totalorder %s143, %s144
      %p158 = scmp.eq.s32.totalorder %s26, 1
      %p159 = por %p157, %p158
      %p161 = scmp.ne.s32.totalorder %s144, %s160
      %p162 = scmp.eq.s32.totalorder %s26, 0
      %p163 = por %p161, %p162
      %s164 = ssub.s32 %s20, %s27
      %p165 = scmp.eq.s32.totalorder %s164, 0
      %s167 = sadd.s32 %s166, 1
      %s168 = scalar_select %p165, %s166, %s167
      %p171 = pneg %p165
      %p172 = scmp.eq.s32.totalorder %s20, 1
      %p173 = por %p171, %p172
      %p174 = scmp.ne.s32.totalorder %s166, %s169
      %p175 = scmp.eq.s32.totalorder %s20, 0
      %p176 = por %p174, %p175
      %p177 = scmp.ne.s32.totalorder %s166, %s169
      %p178 = scmp.eq.s32.totalorder %s25, 1
      %p179 = por %p177, %p178
      %p180 = scmp.ne.s32.totalorder %s169, %s170
      %p181 = scmp.eq.s32.totalorder %s25, 0
      %p182 = por %p180, %p181
      %p183 = scmp.ne.s32.totalorder %s169, %s170
      %p184 = scmp.eq.s32.totalorder %s26, 1
      %p185 = por %p183, %p184
      %p187 = scmp.ne.s32.totalorder %s170, %s186
      %p188 = scmp.eq.s32.totalorder %s26, 0
      %p189 = por %p187, %p188
      %s190 = ssub.s32 %s20, %s27
      %p191 = scmp.eq.s32.totalorder %s190, 0
      %s193 = sadd.s32 %s192, 1
      %s194 = scalar_select %p191, %s192, %s193
      %p197 = pneg %p191
      %p198 = scmp.eq.s32.totalorder %s20, 1
      %p199 = por %p197, %p198
      %p200 = scmp.ne.s32.totalorder %s192, %s195
      %p201 = scmp.eq.s32.totalorder %s20, 0
      %p202 = por %p200, %p201
      %p203 = scmp.ne.s32.totalorder %s192, %s195
      %p204 = scmp.eq.s32.totalorder %s25, 1
      %p205 = por %p203, %p204
      %p206 = scmp.ne.s32.totalorder %s195, %s196
      %p207 = scmp.eq.s32.totalorder %s25, 0
      %p208 = por %p206, %p207
      %p209 = scmp.ne.s32.totalorder %s195, %s196
      %p210 = scmp.eq.s32.totalorder %s26, 1
      %p211 = por %p209, %p210
      %p213 = scmp.ne.s32.totalorder %s196, %s212
      %p214 = scmp.eq.s32.totalorder %s26, 0
      %p215 = por %p213, %p214
      %p216 = scmp.le.s32.totalorder 1, %s20
      %p217 = scmp.lt.s32.totalorder %s20, 3
      %p218 = pnand %p216, %p217
      %p219 = pneg %p218
      // Predicated region
      $region9: #{tpu_custom_call.1} parent=5 // pred_check
        _
      $region10: #{tpu_custom_call.1} parent=5 // pred_check_branch
        %221 = sbr.rel (%p218) target = $region12
      $region11: #{tpu_custom_call.1} parent=5 // pred_region
        %s222 = ssub.s32 %s20, 1
        // Predicated region
        $region13: #{tpu_custom_call.1} parent=11 // pred_check
          %p223 = pneg %p67
        $region14: #{tpu_custom_call.1} parent=11 // pred_check_branch
          %225 = sbr.rel (%p223) target = $region16
        $region15: #{tpu_custom_call.1} parent=11 // pred_region
          _
        $region16: #{tpu_custom_call.1} parent=11 // pred_fallthru
          _
        // Predicated region
        $region17: #{tpu_custom_call.1} parent=11 // pred_check
          %p226 = pneg %p88
        $region18: #{tpu_custom_call.1} parent=11 // pred_check_branch
          %228 = sbr.rel (%p226) target = $region20
        $region19: #{tpu_custom_call.1} parent=11 // pred_region
          _
        $region20: #{tpu_custom_call.1} parent=11 // pred_fallthru
          _
        // Predicated region
        $region21: #{tpu_custom_call.1} parent=11 // pred_check
          %p229 = pneg %p109
        $region22: #{tpu_custom_call.1} parent=11 // pred_check_branch
          %231 = sbr.rel (%p229) target = $region24
        $region23: #{tpu_custom_call.1} parent=11 // pred_region
          _
        $region24: #{tpu_custom_call.1} parent=11 // pred_fallthru
          _
        // Predicated region
        $region25: #{tpu_custom_call.1} parent=11 // pred_check
          %p232 = pneg %p130
        $region26: #{tpu_custom_call.1} parent=11 // pred_check_branch
          %234 = sbr.rel (%p232) target = $region28
        $region27: #{tpu_custom_call.1} parent=11 // pred_region
          _
        $region28: #{tpu_custom_call.1} parent=11 // pred_fallthru
          _
      $region12: #{tpu_custom_call.1} parent=5 // pred_fallthru
        _
      %p235 = scmp.lt.s32.totalorder %s20, 2
      // Predicated region
      $region29: #{tpu_custom_call.1} parent=5 // pred_check
        %p236 = pneg %p235
      $region30: #{tpu_custom_call.1} parent=5 // pred_check_branch
        %238 = sbr.rel (%p236) target = $region32
      $region31: #{tpu_custom_call.1} parent=5 // pred_region
        // Predicated region
        $region33: #{tpu_custom_call.1} parent=31 // pred_check
          %p239 = pneg %p40
        $region34: #{tpu_custom_call.1} parent=31 // pred_check_branch
          %241 = sbr.rel (%p239) target = $region36
        $region35: #{tpu_custom_call.1} parent=31 // pred_region
          %s242 = smul.u32 16, %s20
          %p243 = scmp.lt.s32.totalorder %s242, 31
          %s244 = scalar_select %p243, %s242, 31
          %s245 = smul.addr %s244, 4
          %s246 = scalar_lea.vmem %s0, %s245
          %s247 = smul.u32 16, %s20
        $region36: #{tpu_custom_call.1} parent=31 // pred_fallthru
          _
      $region32: #{tpu_custom_call.1} parent=5 // pred_fallthru
        _
      %p248 = scmp.le.s32.totalorder 1, %s20
      %p249 = scmp.lt.s32.totalorder %s20, 3
      %p250 = pnand %p248, %p249
      %p251 = pneg %p250
      // Predicated region
      $region37: #{tpu_custom_call.1} parent=5 // pred_check
        _
      $region38: #{tpu_custom_call.1} parent=5 // pred_check_branch
        %253 = sbr.rel (%p250) target = $region40
      $region39: #{tpu_custom_call.1} parent=5 // pred_region
        %s254 = ssub.s32 %s20, 1
        %s255 = smul.u32 16, %s25
        %p256 = scmp.lt.s32.totalorder %s255, 31
        %s257 = scalar_select %p256, %s255, 31
        %s258 = smul.addr %s257, 4
        %s259 = scalar_lea.vmem %s0, %s258
        %p260 = pneg %p46
        %p261 = pneg %p43
        %p262 = pneg %p67
        %p263 = pneg %p64
        %p264 = pneg %p88
        %p265 = pneg %p85
        %p266 = pneg %p109
        %p267 = pneg %p106
        %p268 = pneg %p130
        %p269 = pneg %p127
        %p270 = pneg %p156
        %p271 = pneg %p153
        %s272 = sand.u32 %s143, 1
        %s273 = scalar_lea.sflag [#allocation3], %s272
        %s274 = sand.u32 %s143, 1
        %s275 = smul.addr %s274, 32
        %s276 = scalar_lea.vmem [#allocation2], %s275
        %p277 = pneg %p182
        %p278 = pneg %p179
        %s279 = sand.u32 %s25, 1
        %s280 = scalar_lea.sflag [#allocation5], %s279
        %s281 = sand.u32 %s169, 1
        %s282 = smul.addr %s281, 16
        %s283 = scalar_lea.vmem [#allocation4], %s282
        %p284 = pneg %p208
        %p285 = pneg %p205
        %s286 = sand.u32 %s25, 1
        %s287 = scalar_lea.sflag [#allocation5], %s286
        %s288 = sand.u32 %s195, 1
        %s289 = smul.addr %s288, 16
        %s290 = scalar_lea.vmem [#allocation6], %s289
        %s291 = smul.u32 16, %s25
        %p292 = scmp.lt.s32.totalorder %s291, 31
        %s293 = scalar_select %p292, %s291, 31
        %s294 = smul.addr %s293, 4
        %s295 = scalar_lea.vmem %s0, %s294
        %s296 = smul.u32 16, %s25
        %s297 = smul.u32 2, %s25
        %s298 = smul.u32 2, %s25
        %v300 = vld [vmem:[%s295] sm:$0xf]
        %v301 = vld [vmem:[%s295 + $0x4] sm:$0xf]
        %v302 = vld [vmem:[%s295 + $0x8] sm:$0xf]
        %v303 = vld [vmem:[%s295 + $0xc] sm:$0xf]
        %v304 = vld [vmem:[%s295 + $0x10] sm:$0xf]
        %v305 = vld [vmem:[%s295 + $0x14] sm:$0xf]
        %v306 = vld [vmem:[%s295 + $0x18] sm:$0xf]
        %v307 = vld [vmem:[%s295 + $0x1c] sm:$0xf]
        %v308 = vld [vmem:[%s295 + $0x20] sm:$0xf]
        %v309 = vld [vmem:[%s295 + $0x24] sm:$0xf]
        %v310 = vld [vmem:[%s295 + $0x28] sm:$0xf]
        %v311 = vld [vmem:[%s295 + $0x2c] sm:$0xf]
        %v312 = vld [vmem:[%s295 + $0x30] sm:$0xf]
        %v313 = vld [vmem:[%s295 + $0x34] sm:$0xf]
        %v314 = vld [vmem:[%s295 + $0x38] sm:$0xf]
        %v315 = vld [vmem:[%s295 + $0x3c] sm:$0xf]
        %v316 = vld [vmem:[%s1] sm:$0xf]
        %v317 = vld [vmem:[%s1 + $0x4] sm:$0xf]
        %v318 = vld [vmem:[%s1 + $0x8] sm:$0xf]
        %v319 = vld [vmem:[%s1 + $0xc] sm:$0xf]
        %v320 = vld [vmem:[%s1 + $0x10] sm:$0xf]
        %v321 = vld [vmem:[%s2] sm:$0x1]
        %v323 = vlaneseq
        %v324 = vshrl.u32 %v323, 7
        %v325 = vsub.s32 0, %v324
        %v326 = vrot.slane %v321, %v325
        %v344 = vunpack.c.l.b16 %v300
        %v345 = vunpack.c.l.b16 %v301
        %v346 = vunpack.c.l.b16 %v302
        %v347 = vunpack.c.l.b16 %v303
        %v348 = vunpack.c.l.b16 %v304
        %v349 = vunpack.c.l.b16 %v305
        %v350 = vunpack.c.l.b16 %v306
        %v351 = vunpack.c.l.b16 %v307
        %v352 = vunpack.c.l.b16 %v308
        %v353 = vunpack.c.l.b16 %v309
        %v354 = vunpack.c.l.b16 %v310
        %v355 = vunpack.c.l.b16 %v311
        %v356 = vunpack.c.l.b16 %v312
        %v357 = vunpack.c.l.b16 %v313
        %v358 = vunpack.c.l.b16 %v314
        %v359 = vunpack.c.l.b16 %v315
        %v360 = vpack.c.b16 %v345, %v344
        %v361 = vpack.c.b16 %v347, %v346
        %v362 = vpack.c.b16 %v349, %v348
        %v363 = vpack.c.b16 %v351, %v350
        %v364 = vpack.c.b16 %v353, %v352
        %v365 = vpack.c.b16 %v355, %v354
        %v366 = vpack.c.b16 %v357, %v356
        %v367 = vpack.c.b16 %v359, %v358
        %v373 = vunpack.c.l.b16 %v316
        %v374 = vunpack.c.l.b16 %v317
        %v375 = vunpack.c.l.b16 %v318
        %v376 = vunpack.c.l.b16 %v319
        %v377 = vunpack.c.l.b16 %v320
        %v378 = vpack.c.b16 %v374, %v373
        %v379 = vpack.c.b16 %v376, %v375
        %v380 = vpack.c.b16 %v377, %v377
        %vm383 = vcmask 326656
        %v385 = vsel %vm383, %v360, 0
        %v388 = vsel %vm383, %v361, 0
        %v391 = vsel %vm383, %v362, 0
        %v394 = vsel %vm383, %v363, 0
        %v397 = vsel %vm383, %v364, 0
        %v400 = vsel %vm383, %v365, 0
        %v403 = vsel %vm383, %v366, 0
        %v406 = vsel %vm383, %v367, 0
        %vm408 = vcmask 1043456
        %v410 = vsel %vm408, %v380, 0
        %412 = vmatprep.subr.bf16.mxu0 0
        %413 = vmatpush1.bf16.msra.mxu0 %v378
        %414 = vmatprep.subr.bf16.mxu0 0
        %415 = vmatpush1.bf16.msra.mxu0 %v379
        %416 = vmatprep.subr.bf16.mxu0 0
        %417 = vmatpush1.bf16.msra.mxu0 %v410
        %418 = vmatprep.subr.bf16.mxu0 0
        %419 = vmatpush1.bf16.msra.mxu0 0
        %420 = vmatprep.subr.bf16.mxu0 0
        %421 = vmatpush1.bf16.msra.mxu0 0
        %422 = vmatprep.subr.bf16.mxu0 0
        %423 = vmatpush1.bf16.msra.mxu0 0
        %424 = vmatprep.subr.bf16.mxu0 0
        %425 = vmatpush1.bf16.msra.mxu0 0
        %426 = vmatprep.subr.bf16.mxu0 0
        %427 = vmatpush1.bf16.msra.mxu0 0
        %428 = vmatprep.subr.bf16.mxu0 0
        %429 = vmatpush1.bf16.msra.mxu0 0
        %430 = vmatprep.subr.bf16.mxu0 0
        %431 = vmatpush1.bf16.msra.mxu0 0
        %432 = vmatprep.subr.bf16.mxu0 0
        %433 = vmatpush1.bf16.msra.mxu0 0
        %434 = vmatprep.subr.bf16.mxu0 0
        %435 = vmatpush1.bf16.msra.mxu0 0
        %436 = vmatprep.subr.bf16.mxu0 0
        %437 = vmatpush1.bf16.msra.mxu0 0
        %438 = vmatprep.subr.bf16.mxu0 0
        %439 = vmatpush1.bf16.msra.mxu0 0
        %440 = vmatprep.subr.bf16.mxu0 0
        %441 = vmatpush1.bf16.msra.mxu0 0
        %442 = vmatprep.subr.bf16.mxu0 0
        %443 = vmatpush1.bf16.msra.mxu0 0
        %444 = vmatprep.mubr.bf16.mxu0 0
        %445 = vmatmul.mubr.bf16.gmra.mrb[0].mxu0 %v385
        %v446 = vpop.f32.mrb[0].mxu0
        %v447 = vadd.f32 %v326, %v446
        %v448 = vpop.f32.mrb[0].mxu0
        %v449 = vpop.f32.mrb[0].mxu0
        %v450 = vadd.f32 %v326, %v449
        %v451 = vpop.f32.mrb[0].mxu0
        %452 = vmatprep.mubr.bf16.mxu0 0
        %453 = vmatmul.mubr.bf16.gmra.mrb[0].mxu0 %v388
        %v454 = vpop.f32.mrb[0].mxu0
        %v455 = vadd.f32 %v326, %v454
        %v456 = vpop.f32.mrb[0].mxu0
        %v457 = vpop.f32.mrb[0].mxu0
        %v458 = vadd.f32 %v326, %v457
        %v459 = vpop.f32.mrb[0].mxu0
        %460 = vmatprep.mubr.bf16.mxu0 0
        %461 = vmatmul.mubr.bf16.gmra.mrb[0].mxu0 %v391
        %v462 = vpop.f32.mrb[0].mxu0
        %v463 = vadd.f32 %v326, %v462
        %v464 = vpop.f32.mrb[0].mxu0
        %v465 = vpop.f32.mrb[0].mxu0
        %v466 = vadd.f32 %v326, %v465
        %v467 = vpop.f32.mrb[0].mxu0
        %468 = vmatprep.mubr.bf16.mxu0 0
        %469 = vmatmul.mubr.bf16.gmra.mrb[0].mxu0 %v394
        %v470 = vpop.f32.mrb[0].mxu0
        %v471 = vadd.f32 %v326, %v470
        %v472 = vpop.f32.mrb[0].mxu0
        %v473 = vpop.f32.mrb[0].mxu0
        %v474 = vadd.f32 %v326, %v473
        %v475 = vpop.f32.mrb[0].mxu0
        %476 = vmatprep.mubr.bf16.mxu0 0
        %477 = vmatmul.mubr.bf16.gmra.mrb[0].mxu0 %v397
        %v478 = vpop.f32.mrb[0].mxu0
        %v479 = vadd.f32 %v326, %v478
        %v480 = vpop.f32.mrb[0].mxu0
        %v481 = vpop.f32.mrb[0].mxu0
        %v482 = vadd.f32 %v326, %v481
        %v483 = vpop.f32.mrb[0].mxu0
        %484 = vmatprep.mubr.bf16.mxu0 0
        %485 = vmatmul.mubr.bf16.gmra.mrb[0].mxu0 %v400
        %v486 = vpop.f32.mrb[0].mxu0
        %v487 = vadd.f32 %v326, %v486
        %v488 = vpop.f32.mrb[0].mxu0
        %v489 = vpop.f32.mrb[0].mxu0
        %v490 = vadd.f32 %v326, %v489
        %v491 = vpop.f32.mrb[0].mxu0
        %492 = vmatprep.mubr.bf16.mxu0 0
        %493 = vmatmul.mubr.bf16.gmra.mrb[0].mxu0 %v403
        %v494 = vpop.f32.mrb[0].mxu0
        %v495 = vadd.f32 %v326, %v494
        %v496 = vpop.f32.mrb[0].mxu0
        %v497 = vpop.f32.mrb[0].mxu0
        %v498 = vadd.f32 %v326, %v497
        %v499 = vpop.f32.mrb[0].mxu0
        %500 = vmatprep.mubr.bf16.mxu0 0
        %501 = vmatmul.mubr.bf16.gmra.mrb[0].mxu0 %v406
        %v502 = vpop.f32.mrb[0].mxu0
        %v503 = vadd.f32 %v326, %v502
        %v504 = vpop.f32.mrb[0].mxu0
        %v505 = vpop.f32.mrb[0].mxu0
        %v506 = vadd.f32 %v326, %v505
        %v507 = vpop.f32.mrb[0].mxu0
        %508 = vdwg.mxu0
        %v509 = vtanh.pop %v447
        %v510 = vtanh.pop %v450
        %v511 = vtanh.pop %v455
        %v512 = vtanh.pop %v458
        %v513 = vtanh.pop %v463
        %v514 = vtanh.pop %v466
        %v515 = vtanh.pop %v471
        %v516 = vtanh.pop %v474
        %v517 = vtanh.pop %v479
        %v518 = vtanh.pop %v482
        %v519 = vtanh.pop %v487
        %v520 = vtanh.pop %v490
        %v521 = vtanh.pop %v495
        %v522 = vtanh.pop %v498
        %v523 = vtanh.pop %v503
        %v524 = vtanh.pop %v506
        %v525 = vpack.c.bf16 %v510, %v509
        %v526 = vpack.c.bf16 %v512, %v511
        %v527 = vpack.c.bf16 %v514, %v513
        %v528 = vpack.c.bf16 %v516, %v515
        %v529 = vpack.c.bf16 %v518, %v517
        %v530 = vpack.c.bf16 %v520, %v519
        %v531 = vpack.c.bf16 %v522, %v521
        %v532 = vpack.c.bf16 %v524, %v523
        %v533 = vld [vmem:[%s3] sm:$0xf]
        %v534 = vld [vmem:[%s3 + $0x4] sm:$0xf]
        %v535 = vld [vmem:[%s3 + $0x8] sm:$0xf]
        %v536 = vld [vmem:[%s3 + $0xc] sm:$0xf]
        %v537 = vld [vmem:[%s4] sm:$0x1]
        %v539 = vlaneseq
        %v540 = vshrl.u32 %v539, 7
        %v541 = vsub.s32 0, %v540
        %v542 = vrot.slane %v537, %v541
        %v548 = vunpack.c.l.b16 %v533
        %v549 = vunpack.c.l.b16 %v534
        %v550 = vunpack.c.l.b16 %v535
        %v551 = vunpack.c.l.b16 %v536
        %v552 = vpack.c.b16 %v549, %v548
        %v553 = vpack.c.b16 %v551, %v550
        %vm556 = vcmask 261120
        %v558 = vsel %vm556, %v525, 0
        %v561 = vsel %vm556, %v526, 0
        %v564 = vsel %vm556, %v527, 0
        %v567 = vsel %vm556, %v528, 0
        %v570 = vsel %vm556, %v529, 0
        %v573 = vsel %vm556, %v530, 0
        %v576 = vsel %vm556, %v531, 0
        %v579 = vsel %vm556, %v532, 0
        %581 = vmatprep.subr.bf16.mxu0 0
        %582 = vmatpush1.bf16.msra.mxu0 %v552
        %583 = vmatprep.subr.bf16.mxu0 0
        %584 = vmatpush1.bf16.msra.mxu0 %v553
        %585 = vmatprep.subr.bf16.mxu0 0
        %586 = vmatpush1.bf16.msra.mxu0 0
        %587 = vmatprep.subr.bf16.mxu0 0
        %588 = vmatpush1.bf16.msra.mxu0 0
        %589 = vmatprep.subr.bf16.mxu0 0
        %590 = vmatpush1.bf16.msra.mxu0 0
        %591 = vmatprep.subr.bf16.mxu0 0
        %592 = vmatpush1.bf16.msra.mxu0 0
        %593 = vmatprep.subr.bf16.mxu0 0
        %594 = vmatpush1.bf16.msra.mxu0 0
        %595 = vmatprep.subr.bf16.mxu0 0
        %596 = vmatpush1.bf16.msra.mxu0 0
        %597 = vmatprep.subr.bf16.mxu0 0
        %598 = vmatpush1.bf16.msra.mxu0 0
        %599 = vmatprep.subr.bf16.mxu0 0
        %600 = vmatpush1.bf16.msra.mxu0 0
        %601 = vmatprep.subr.bf16.mxu0 0
        %602 = vmatpush1.bf16.msra.mxu0 0
        %603 = vmatprep.subr.bf16.mxu0 0
        %604 = vmatpush1.bf16.msra.mxu0 0
        %605 = vmatprep.subr.bf16.mxu0 0
        %606 = vmatpush1.bf16.msra.mxu0 0
        %607 = vmatprep.subr.bf16.mxu0 0
        %608 = vmatpush1.bf16.msra.mxu0 0
        %609 = vmatprep.subr.bf16.mxu0 0
        %610 = vmatpush1.bf16.msra.mxu0 0
        %611 = vmatprep.subr.bf16.mxu0 0
        %612 = vmatpush1.bf16.msra.mxu0 0
        %613 = vmatprep.mubr.bf16.mxu0 0
        %614 = vmatmul.mubr.bf16.gmra.mrb[0].mxu0 %v558
        %v615 = vpop.f32.mrb[0].mxu0
        %v616 = vadd.f32 %v542, %v615
        %v617 = vpop.f32.mrb[0].mxu0
        %v618 = vpop.f32.mrb[0].mxu0
        %v619 = vadd.f32 %v542, %v618
        %v620 = vpop.f32.mrb[0].mxu0
        %621 = vmatprep.mubr.bf16.mxu0 0
        %622 = vmatmul.mubr.bf16.gmra.mrb[0].mxu0 %v561
        %v623 = vpop.f32.mrb[0].mxu0
        %v624 = vadd.f32 %v542, %v623
        %v625 = vpop.f32.mrb[0].mxu0
        %v626 = vpop.f32.mrb[0].mxu0
        %v627 = vadd.f32 %v542, %v626
        %v628 = vpop.f32.mrb[0].mxu0
        %629 = vmatprep.mubr.bf16.mxu0 0
        %630 = vmatmul.mubr.bf16.gmra.mrb[0].mxu0 %v564
        %v631 = vpop.f32.mrb[0].mxu0
        %v632 = vadd.f32 %v542, %v631
        %v633 = vpop.f32.mrb[0].mxu0
        %v634 = vpop.f32.mrb[0].mxu0
        %v635 = vadd.f32 %v542, %v634
        %v636 = vpop.f32.mrb[0].mxu0
        %637 = vmatprep.mubr.bf16.mxu0 0
        %638 = vmatmul.mubr.bf16.gmra.mrb[0].mxu0 %v567
        %v639 = vpop.f32.mrb[0].mxu0
        %v640 = vadd.f32 %v542, %v639
        %v641 = vpop.f32.mrb[0].mxu0
        %v642 = vpop.f32.mrb[0].mxu0
        %v643 = vadd.f32 %v542, %v642
        %v644 = vpop.f32.mrb[0].mxu0
        %645 = vmatprep.mubr.bf16.mxu0 0
        %646 = vmatmul.mubr.bf16.gmra.mrb[0].mxu0 %v570
        %v647 = vpop.f32.mrb[0].mxu0
        %v648 = vadd.f32 %v542, %v647
        %v649 = vpop.f32.mrb[0].mxu0
        %v650 = vpop.f32.mrb[0].mxu0
        %v651 = vadd.f32 %v542, %v650
        %v652 = vpop.f32.mrb[0].mxu0
        %653 = vmatprep.mubr.bf16.mxu0 0
        %654 = vmatmul.mubr.bf16.gmra.mrb[0].mxu0 %v573
        %v655 = vpop.f32.mrb[0].mxu0
        %v656 = vadd.f32 %v542, %v655
        %v657 = vpop.f32.mrb[0].mxu0
        %v658 = vpop.f32.mrb[0].mxu0
        %v659 = vadd.f32 %v542, %v658
        %v660 = vpop.f32.mrb[0].mxu0
        %661 = vmatprep.mubr.bf16.mxu0 0
        %662 = vmatmul.mubr.bf16.gmra.mrb[0].mxu0 %v576
        %v663 = vpop.f32.mrb[0].mxu0
        %v664 = vadd.f32 %v542, %v663
        %v665 = vpop.f32.mrb[0].mxu0
        %v666 = vpop.f32.mrb[0].mxu0
        %v667 = vadd.f32 %v542, %v666
        %v668 = vpop.f32.mrb[0].mxu0
        %669 = vmatprep.mubr.bf16.mxu0 0
        %670 = vmatmul.mubr.bf16.gmra.mrb[0].mxu0 %v579
        %v671 = vpop.f32.mrb[0].mxu0
        %v672 = vadd.f32 %v542, %v671
        %v673 = vpop.f32.mrb[0].mxu0
        %v674 = vpop.f32.mrb[0].mxu0
        %v675 = vadd.f32 %v542, %v674
        %v676 = vpop.f32.mrb[0].mxu0
        %677 = vdwg.mxu0
        %v678 = vtanh.pop %v616
        %v679 = vtanh.pop %v619
        %v680 = vtanh.pop %v624
        %v681 = vtanh.pop %v627
        %v682 = vtanh.pop %v632
        %v683 = vtanh.pop %v635
        %v684 = vtanh.pop %v640
        %v685 = vtanh.pop %v643
        %v686 = vtanh.pop %v648
        %v687 = vtanh.pop %v651
        %v688 = vtanh.pop %v656
        %v689 = vtanh.pop %v659
        %v690 = vtanh.pop %v664
        %v691 = vtanh.pop %v667
        %v692 = vtanh.pop %v672
        %v693 = vtanh.pop %v675
        %694 = vxpose.xlu0.b32.start [1/16] %v509, 128
        %695 = vxpose.xlu0.b32.cont [2/16] %v510, 128
        %696 = vxpose.xlu0.b32.cont [3/16] %v511, 128
        %697 = vxpose.xlu0.b32.cont [4/16] %v512, 128
        %698 = vxpose.xlu0.b32.cont [5/16] %v513, 128
        %699 = vxpose.xlu0.b32.cont [6/16] %v514, 128
        %700 = vxpose.xlu0.b32.cont [7/16] %v515, 128
        %701 = vxpose.xlu0.b32.cont [8/16] %v516, 128
        %702 = vxpose.xlu0.b32.cont [9/16] %v517, 128
        %703 = vxpose.xlu0.b32.cont [10/16] %v518, 128
        %704 = vxpose.xlu0.b32.cont [11/16] %v519, 128
        %705 = vxpose.xlu0.b32.cont [12/16] %v520, 128
        %706 = vxpose.xlu0.b32.cont [13/16] %v521, 128
        %707 = vxpose.xlu0.b32.cont [14/16] %v522, 128
        %708 = vxpose.xlu0.b32.cont [15/16] %v523, 128
        %709 = vxpose.xlu0.b32.end [16/16] %v524, 128
        %v710 = vpop.trf.xlu0
        %v711 = vpop.trf.xlu0
        %v712 = vpop.trf.xlu0
        %v713 = vpop.trf.xlu0
        %v714 = vpop.trf.xlu0
        %v715 = vpop.trf.xlu0
        %v716 = vpop.trf.xlu0
        %v717 = vpop.trf.xlu0
        %v718 = vpop.trf.xlu0
        %v719 = vpop.trf.xlu0
        %v720 = vpop.trf.xlu0
        %v721 = vpop.trf.xlu0
        %v722 = vpop.trf.xlu0
        %v723 = vpop.trf.xlu0
        %v724 = vpop.trf.xlu0
        %v725 = vpop.trf.xlu0
        %v726 = vpack.c.bf16 %v711, %v710
        %v727 = vpack.c.bf16 %v713, %v712
        %v730 = vunpack.c.l.b16 %v726
        %v731 = vunpack.c.h.b16 %v726
        %v732 = vunpack.c.l.b16 %v727
        %v733 = vunpack.c.h.b16 %v727
        %v734 = vpack.c.b16 %v730, %v730
        %v735 = vpack.c.b16 %v731, %v731
        %v736 = vpack.c.b16 %v732, %v732
        %v737 = vpack.c.b16 %v733, %v733
        %742 = vst [vmem:[%s276] sm:$0xf] %v734
        %743 = vst [vmem:[%s276 + $0x4] sm:$0xf] %v735
        %744 = vst [vmem:[%s276 + $0x8] sm:$0xf] %v736
        %745 = vst [vmem:[%s276 + $0xc] sm:$0xf] %v737
        %746 = vxpose.xlu0.b32.start [1/16] %v678, 128
        %747 = vxpose.xlu0.b32.cont [2/16] %v679, 128
        %748 = vxpose.xlu0.b32.cont [3/16] %v680, 128
        %749 = vxpose.xlu0.b32.cont [4/16] %v681, 128
        %750 = vxpose.xlu0.b32.cont [5/16] %v682, 128
        %751 = vxpose.xlu0.b32.cont [6/16] %v683, 128
        %752 = vxpose.xlu0.b32.cont [7/16] %v684, 128
        %753 = vxpose.xlu0.b32.cont [8/16] %v685, 128
        %754 = vxpose.xlu0.b32.cont [9/16] %v686, 128
        %755 = vxpose.xlu0.b32.cont [10/16] %v687, 128
        %756 = vxpose.xlu0.b32.cont [11/16] %v688, 128
        %757 = vxpose.xlu0.b32.cont [12/16] %v689, 128
        %758 = vxpose.xlu0.b32.cont [13/16] %v690, 128
        %759 = vxpose.xlu0.b32.cont [14/16] %v691, 128
        %760 = vxpose.xlu0.b32.cont [15/16] %v692, 128
        %761 = vxpose.xlu0.b32.end [16/16] %v693, 128
        %v762 = vpop.trf.xlu0
        %v763 = vpop.trf.xlu0
        %v764 = vpop.trf.xlu0
        %v765 = vpop.trf.xlu0
        %v766 = vpop.trf.xlu0
        %v767 = vpop.trf.xlu0
        %v768 = vpop.trf.xlu0
        %v769 = vpop.trf.xlu0
        %v770 = vpop.trf.xlu0
        %v771 = vpop.trf.xlu0
        %v772 = vpop.trf.xlu0
        %v773 = vpop.trf.xlu0
        %v774 = vpop.trf.xlu0
        %v775 = vpop.trf.xlu0
        %v776 = vpop.trf.xlu0
        %v777 = vpop.trf.xlu0
        %v778 = vpack.c.bf16 %v763, %v762
        %v779 = vpack.c.bf16 %v765, %v764
        %v782 = vunpack.c.l.b16 %v778
        %v783 = vunpack.c.h.b16 %v778
        %v784 = vunpack.c.l.b16 %v779
        %v785 = vunpack.c.h.b16 %v779
        %v786 = vpack.c.b16 %v782, %v782
        %v787 = vpack.c.b16 %v783, %v783
        %v788 = vpack.c.b16 %v784, %v784
        %v789 = vpack.c.b16 %v785, %v785
        %794 = vst [vmem:[%s276 + $0x10] sm:$0xf] %v786
        %795 = vst [vmem:[%s276 + $0x14] sm:$0xf] %v787
        %796 = vst [vmem:[%s276 + $0x18] sm:$0xf] %v788
        %797 = vst [vmem:[%s276 + $0x1c] sm:$0xf] %v789
        %v798 = vsel %vm556, %v509, -inf
        %v799 = vrot.slane %v798, 4
        %v800 = vmax.f32 %v798, %v799
        %v801 = vrot.slane %v800, 2
        %v802 = vmax.f32 %v800, %v801
        %v803 = vrot.slane %v802, 1
        %v804 = vmax.f32 %v802, %v803
        %v805 = vsel %vm556, %v510, -inf
        %v806 = vrot.slane %v805, 4
        %v807 = vmax.f32 %v805, %v806
        %v808 = vrot.slane %v807, 2
        %v809 = vmax.f32 %v807, %v808
        %v810 = vrot.slane %v809, 1
        %v811 = vmax.f32 %v809, %v810
        %v812 = vsel %vm556, %v511, -inf
        %v813 = vrot.slane %v812, 4
        %v814 = vmax.f32 %v812, %v813
        %v815 = vrot.slane %v814, 2
        %v816 = vmax.f32 %v814, %v815
        %v817 = vrot.slane %v816, 1
        %v818 = vmax.f32 %v816, %v817
        %v819 = vsel %vm556, %v512, -inf
        %v820 = vrot.slane %v819, 4
        %v821 = vmax.f32 %v819, %v820
        %v822 = vrot.slane %v821, 2
        %v823 = vmax.f32 %v821, %v822
        %v824 = vrot.slane %v823, 1
        %v825 = vmax.f32 %v823, %v824
        %v826 = vsel %vm556, %v513, -inf
        %v827 = vrot.slane %v826, 4
        %v828 = vmax.f32 %v826, %v827
        %v829 = vrot.slane %v828, 2
        %v830 = vmax.f32 %v828, %v829
        %v831 = vrot.slane %v830, 1
        %v832 = vmax.f32 %v830, %v831
        %v833 = vsel %vm556, %v514, -inf
        %v834 = vrot.slane %v833, 4
        %v835 = vmax.f32 %v833, %v834
        %v836 = vrot.slane %v835, 2
        %v837 = vmax.f32 %v835, %v836
        %v838 = vrot.slane %v837, 1
        %v839 = vmax.f32 %v837, %v838
        %v840 = vsel %vm556, %v515, -inf
        %v841 = vrot.slane %v840, 4
        %v842 = vmax.f32 %v840, %v841
        %v843 = vrot.slane %v842, 2
        %v844 = vmax.f32 %v842, %v843
        %v845 = vrot.slane %v844, 1
        %v846 = vmax.f32 %v844, %v845
        %v847 = vsel %vm556, %v516, -inf
        %v848 = vrot.slane %v847, 4
        %v849 = vmax.f32 %v847, %v848
        %v850 = vrot.slane %v849, 2
        %v851 = vmax.f32 %v849, %v850
        %v852 = vrot.slane %v851, 1
        %v853 = vmax.f32 %v851, %v852
        %v854 = vsel %vm556, %v517, -inf
        %v855 = vrot.slane %v854, 4
        %v856 = vmax.f32 %v854, %v855
        %v857 = vrot.slane %v856, 2
        %v858 = vmax.f32 %v856, %v857
        %v859 = vrot.slane %v858, 1
        %v860 = vmax.f32 %v858, %v859
        %v861 = vsel %vm556, %v518, -inf
        %v862 = vrot.slane %v861, 4
        %v863 = vmax.f32 %v861, %v862
        %v864 = vrot.slane %v863, 2
        %v865 = vmax.f32 %v863, %v864
        %v866 = vrot.slane %v865, 1
        %v867 = vmax.f32 %v865, %v866
        %v868 = vsel %vm556, %v519, -inf
        %v869 = vrot.slane %v868, 4
        %v870 = vmax.f32 %v868, %v869
        %v871 = vrot.slane %v870, 2
        %v872 = vmax.f32 %v870, %v871
        %v873 = vrot.slane %v872, 1
        %v874 = vmax.f32 %v872, %v873
        %v875 = vsel %vm556, %v520, -inf
        %v876 = vrot.slane %v875, 4
        %v877 = vmax.f32 %v875, %v876
        %v878 = vrot.slane %v877, 2
        %v879 = vmax.f32 %v877, %v878
        %v880 = vrot.slane %v879, 1
        %v881 = vmax.f32 %v879, %v880
        %v882 = vsel %vm556, %v521, -inf
        %v883 = vrot.slane %v882, 4
        %v884 = vmax.f32 %v882, %v883
        %v885 = vrot.slane %v884, 2
        %v886 = vmax.f32 %v884, %v885
        %v887 = vrot.slane %v886, 1
        %v888 = vmax.f32 %v886, %v887
        %v889 = vsel %vm556, %v522, -inf
        %v890 = vrot.slane %v889, 4
        %v891 = vmax.f32 %v889, %v890
        %v892 = vrot.slane %v891, 2
        %v893 = vmax.f32 %v891, %v892
        %v894 = vrot.slane %v893, 1
        %v895 = vmax.f32 %v893, %v894
        %v896 = vsel %vm556, %v523, -inf
        %v897 = vrot.slane %v896, 4
        %v898 = vmax.f32 %v896, %v897
        %v899 = vrot.slane %v898, 2
        %v900 = vmax.f32 %v898, %v899
        %v901 = vrot.slane %v900, 1
        %v902 = vmax.f32 %v900, %v901
        %v903 = vsel %vm556, %v524, -inf
        %v904 = vrot.slane %v903, 4
        %v905 = vmax.f32 %v903, %v904
        %v906 = vrot.slane %v905, 2
        %v907 = vmax.f32 %v905, %v906
        %v908 = vrot.slane %v907, 1
        %v909 = vmax.f32 %v907, %v908
        %v910 = vlaneseq
        %v911 = vshrl.u32 %v910, 7
        %vm912 = vcmp.eq.f32.partialorder %v509, %v804
        %vm913 = vcmp.eq.f32.partialorder %v510, %v811
        %vm914 = vcmp.eq.f32.partialorder %v511, %v818
        %vm915 = vcmp.eq.f32.partialorder %v512, %v825
        %vm916 = vcmp.eq.f32.partialorder %v513, %v832
        %vm917 = vcmp.eq.f32.partialorder %v514, %v839
        %vm918 = vcmp.eq.f32.partialorder %v515, %v846
        %vm919 = vcmp.eq.f32.partialorder %v516, %v853
        %vm920 = vcmp.eq.f32.partialorder %v517, %v860
        %vm921 = vcmp.eq.f32.partialorder %v518, %v867
        %vm922 = vcmp.eq.f32.partialorder %v519, %v874
        %vm923 = vcmp.eq.f32.partialorder %v520, %v881
        %vm924 = vcmp.eq.f32.partialorder %v521, %v888
        %vm925 = vcmp.eq.f32.partialorder %v522, %v895
        %vm926 = vcmp.eq.f32.partialorder %v523, %v902
        %vm927 = vcmp.eq.f32.partialorder %v524, %v909
        %v928 = vsel %vm912, %v911, 8
        %v929 = vsel %vm913, %v911, 8
        %v930 = vsel %vm914, %v911, 8
        %v931 = vsel %vm915, %v911, 8
        %v932 = vsel %vm916, %v911, 8
        %v933 = vsel %vm917, %v911, 8
        %v934 = vsel %vm918, %v911, 8
        %v935 = vsel %vm919, %v911, 8
        %v936 = vsel %vm920, %v911, 8
        %v937 = vsel %vm921, %v911, 8
        %v938 = vsel %vm922, %v911, 8
        %v939 = vsel %vm923, %v911, 8
        %v940 = vsel %vm924, %v911, 8
        %v941 = vsel %vm925, %v911, 8
        %v942 = vsel %vm926, %v911, 8
        %v943 = vsel %vm927, %v911, 8
        %v944 = vsel %vm556, %v928, 2147483647
        %v945 = vrot.slane %v944, 4
        %vm946 = vcmp.lt.s32.totalorder %v944, %v945
        %v947 = vsel %vm946, %v944, %v945
        %v948 = vrot.slane %v947, 2
        %vm949 = vcmp.lt.s32.totalorder %v947, %v948
        %v950 = vsel %vm949, %v947, %v948
        %v951 = vrot.slane %v950, 1
        %vm952 = vcmp.lt.s32.totalorder %v950, %v951
        %v953 = vsel %vm952, %v950, %v951
        %v954 = vsel %vm556, %v929, 2147483647
        %v955 = vrot.slane %v954, 4
        %vm956 = vcmp.lt.s32.totalorder %v954, %v955
        %v957 = vsel %vm956, %v954, %v955
        %v958 = vrot.slane %v957, 2
        %vm959 = vcmp.lt.s32.totalorder %v957, %v958
        %v960 = vsel %vm959, %v957, %v958
        %v961 = vrot.slane %v960, 1
        %vm962 = vcmp.lt.s32.totalorder %v960, %v961
        %v963 = vsel %vm962, %v960, %v961
        %v964 = vsel %vm556, %v930, 2147483647
        %v965 = vrot.slane %v964, 4
        %vm966 = vcmp.lt.s32.totalorder %v964, %v965
        %v967 = vsel %vm966, %v964, %v965
        %v968 = vrot.slane %v967, 2
        %vm969 = vcmp.lt.s32.totalorder %v967, %v968
        %v970 = vsel %vm969, %v967, %v968
        %v971 = vrot.slane %v970, 1
        %vm972 = vcmp.lt.s32.totalorder %v970, %v971
        %v973 = vsel %vm972, %v970, %v971
        %v974 = vsel %vm556, %v931, 2147483647
        %v975 = vrot.slane %v974, 4
        %vm976 = vcmp.lt.s32.totalorder %v974, %v975
        %v977 = vsel %vm976, %v974, %v975
        %v978 = vrot.slane %v977, 2
        %vm979 = vcmp.lt.s32.totalorder %v977, %v978
        %v980 = vsel %vm979, %v977, %v978
        %v981 = vrot.slane %v980, 1
        %vm982 = vcmp.lt.s32.totalorder %v980, %v981
        %v983 = vsel %vm982, %v980, %v981
        %v984 = vsel %vm556, %v932, 2147483647
        %v985 = vrot.slane %v984, 4
        %vm986 = vcmp.lt.s32.totalorder %v984, %v985
        %v987 = vsel %vm986, %v984, %v985
        %v988 = vrot.slane %v987, 2
        %vm989 = vcmp.lt.s32.totalorder %v987, %v988
        %v990 = vsel %vm989, %v987, %v988
        %v991 = vrot.slane %v990, 1
        %vm992 = vcmp.lt.s32.totalorder %v990, %v991
        %v993 = vsel %vm992, %v990, %v991
        %v994 = vsel %vm556, %v933, 2147483647
        %v995 = vrot.slane %v994, 4
        %vm996 = vcmp.lt.s32.totalorder %v994, %v995
        %v997 = vsel %vm996, %v994, %v995
        %v998 = vrot.slane %v997, 2
        %vm999 = vcmp.lt.s32.totalorder %v997, %v998
        %v1000 = vsel %vm999, %v997, %v998
        %v1001 = vrot.slane %v1000, 1
        %vm1002 = vcmp.lt.s32.totalorder %v1000, %v1001
        %v1003 = vsel %vm1002, %v1000, %v1001
        %v1004 = vsel %vm556, %v934, 2147483647
        %v1005 = vrot.slane %v1004, 4
        %vm1006 = vcmp.lt.s32.totalorder %v1004, %v1005
        %v1007 = vsel %vm1006, %v1004, %v1005
        %v1008 = vrot.slane %v1007, 2
        %vm1009 = vcmp.lt.s32.totalorder %v1007, %v1008
        %v1010 = vsel %vm1009, %v1007, %v1008
        %v1011 = vrot.slane %v1010, 1
        %vm1012 = vcmp.lt.s32.totalorder %v1010, %v1011
        %v1013 = vsel %vm1012, %v1010, %v1011
        %v1014 = vsel %vm556, %v935, 2147483647
        %v1015 = vrot.slane %v1014, 4
        %vm1016 = vcmp.lt.s32.totalorder %v1014, %v1015
        %v1017 = vsel %vm1016, %v1014, %v1015
        %v1018 = vrot.slane %v1017, 2
        %vm1019 = vcmp.lt.s32.totalorder %v1017, %v1018
        %v1020 = vsel %vm1019, %v1017, %v1018
        %v1021 = vrot.slane %v1020, 1
        %vm1022 = vcmp.lt.s32.totalorder %v1020, %v1021
        %v1023 = vsel %vm1022, %v1020, %v1021
        %v1024 = vsel %vm556, %v936, 2147483647
        %v1025 = vrot.slane %v1024, 4
        %vm1026 = vcmp.lt.s32.totalorder %v1024, %v1025
        %v1027 = vsel %vm1026, %v1024, %v1025
        %v1028 = vrot.slane %v1027, 2
        %vm1029 = vcmp.lt.s32.totalorder %v1027, %v1028
        %v1030 = vsel %vm1029, %v1027, %v1028
        %v1031 = vrot.slane %v1030, 1
        %vm1032 = vcmp.lt.s32.totalorder %v1030, %v1031
        %v1033 = vsel %vm1032, %v1030, %v1031
        %v1034 = vsel %vm556, %v937, 2147483647
        %v1035 = vrot.slane %v1034, 4
        %vm1036 = vcmp.lt.s32.totalorder %v1034, %v1035
        %v1037 = vsel %vm1036, %v1034, %v1035
        %v1038 = vrot.slane %v1037, 2
        %vm1039 = vcmp.lt.s32.totalorder %v1037, %v1038
        %v1040 = vsel %vm1039, %v1037, %v1038
        %v1041 = vrot.slane %v1040, 1
        %vm1042 = vcmp.lt.s32.totalorder %v1040, %v1041
        %v1043 = vsel %vm1042, %v1040, %v1041
        %v1044 = vsel %vm556, %v938, 2147483647
        %v1045 = vrot.slane %v1044, 4
        %vm1046 = vcmp.lt.s32.totalorder %v1044, %v1045
        %v1047 = vsel %vm1046, %v1044, %v1045
        %v1048 = vrot.slane %v1047, 2
        %vm1049 = vcmp.lt.s32.totalorder %v1047, %v1048
        %v1050 = vsel %vm1049, %v1047, %v1048
        %v1051 = vrot.slane %v1050, 1
        %vm1052 = vcmp.lt.s32.totalorder %v1050, %v1051
        %v1053 = vsel %vm1052, %v1050, %v1051
        %v1054 = vsel %vm556, %v939, 2147483647
        %v1055 = vrot.slane %v1054, 4
        %vm1056 = vcmp.lt.s32.totalorder %v1054, %v1055
        %v1057 = vsel %vm1056, %v1054, %v1055
        %v1058 = vrot.slane %v1057, 2
        %vm1059 = vcmp.lt.s32.totalorder %v1057, %v1058
        %v1060 = vsel %vm1059, %v1057, %v1058
        %v1061 = vrot.slane %v1060, 1
        %vm1062 = vcmp.lt.s32.totalorder %v1060, %v1061
        %v1063 = vsel %vm1062, %v1060, %v1061
        %v1064 = vsel %vm556, %v940, 2147483647
        %v1065 = vrot.slane %v1064, 4
        %vm1066 = vcmp.lt.s32.totalorder %v1064, %v1065
        %v1067 = vsel %vm1066, %v1064, %v1065
        %v1068 = vrot.slane %v1067, 2
        %vm1069 = vcmp.lt.s32.totalorder %v1067, %v1068
        %v1070 = vsel %vm1069, %v1067, %v1068
        %v1071 = vrot.slane %v1070, 1
        %vm1072 = vcmp.lt.s32.totalorder %v1070, %v1071
        %v1073 = vsel %vm1072, %v1070, %v1071
        %v1074 = vsel %vm556, %v941, 2147483647
        %v1075 = vrot.slane %v1074, 4
        %vm1076 = vcmp.lt.s32.totalorder %v1074, %v1075
        %v1077 = vsel %vm1076, %v1074, %v1075
        %v1078 = vrot.slane %v1077, 2
        %vm1079 = vcmp.lt.s32.totalorder %v1077, %v1078
        %v1080 = vsel %vm1079, %v1077, %v1078
        %v1081 = vrot.slane %v1080, 1
        %vm1082 = vcmp.lt.s32.totalorder %v1080, %v1081
        %v1083 = vsel %vm1082, %v1080, %v1081
        %v1084 = vsel %vm556, %v942, 2147483647
        %v1085 = vrot.slane %v1084, 4
        %vm1086 = vcmp.lt.s32.totalorder %v1084, %v1085
        %v1087 = vsel %vm1086, %v1084, %v1085
        %v1088 = vrot.slane %v1087, 2
        %vm1089 = vcmp.lt.s32.totalorder %v1087, %v1088
        %v1090 = vsel %vm1089, %v1087, %v1088
        %v1091 = vrot.slane %v1090, 1
        %vm1092 = vcmp.lt.s32.totalorder %v1090, %v1091
        %v1093 = vsel %vm1092, %v1090, %v1091
        %v1094 = vsel %vm556, %v943, 2147483647
        %v1095 = vrot.slane %v1094, 4
        %vm1096 = vcmp.lt.s32.totalorder %v1094, %v1095
        %v1097 = vsel %vm1096, %v1094, %v1095
        %v1098 = vrot.slane %v1097, 2
        %vm1099 = vcmp.lt.s32.totalorder %v1097, %v1098
        %v1100 = vsel %vm1099, %v1097, %v1098
        %v1101 = vrot.slane %v1100, 1
        %vm1102 = vcmp.lt.s32.totalorder %v1100, %v1101
        %v1103 = vsel %vm1102, %v1100, %v1101
        %v1104 = vlaneseq
        %v1105 = vand.u32 %v1104, 127
        %vm1122 = vcmask 1041409
        %v1123 = vsel %vm1122, %v811, %v804
        %vm1124 = vcmask 1042434
        %v1125 = vsel %vm1124, %v818, %v1123
        %vm1126 = vcmask 1043459
        %v1127 = vsel %vm1126, %v825, %v1125
        %vm1128 = vcmask 1044484
        %v1129 = vsel %vm1128, %v832, %v1127
        %vm1130 = vcmask 1045509
        %v1131 = vsel %vm1130, %v839, %v1129
        %vm1132 = vcmask 1046534
        %v1133 = vsel %vm1132, %v846, %v1131
        %vm1134 = vcmask 1047559
        %v1135 = vsel %vm1134, %v853, %v1133
        %v1136 = vsel %vm1122, %v867, %v860
        %v1137 = vsel %vm1124, %v874, %v1136
        %v1138 = vsel %vm1126, %v881, %v1137
        %v1139 = vsel %vm1128, %v888, %v1138
        %v1140 = vsel %vm1130, %v895, %v1139
        %v1141 = vsel %vm1132, %v902, %v1140
        %v1142 = vsel %vm1134, %v909, %v1141
        %1145 = vst.msk [vmem:[%s283] sm:$0xff] %vm556, %v1135
        %1146 = vst.msk [vmem:[%s283 + $0x8] sm:$0xff] %vm556, %v1142
        %v1147 = vmul.u32 %v953, 32
        %v1148 = vmul.u32 %v963, 32
        %v1149 = vmul.u32 %v973, 32
        %v1150 = vmul.u32 %v983, 32
        %v1151 = vmul.u32 %v993, 32
        %v1152 = vmul.u32 %v1003, 32
        %v1153 = vmul.u32 %v1013, 32
        %v1154 = vmul.u32 %v1023, 32
        %v1155 = vmul.u32 %v1033, 32
        %v1156 = vmul.u32 %v1043, 32
        %v1157 = vmul.u32 %v1053, 32
        %v1158 = vmul.u32 %v1063, 32
        %v1159 = vmul.u32 %v1073, 32
        %v1160 = vmul.u32 %v1083, 32
        %v1161 = vmul.u32 %v1093, 32
        %v1162 = vmul.u32 %v1103, 32
        %v1163 = vadd.s32 %v1147, %v1105
        %v1164 = vadd.s32 %v1148, %v1105
        %v1165 = vadd.s32 %v1149, %v1105
        %v1166 = vadd.s32 %v1150, %v1105
        %v1167 = vadd.s32 %v1151, %v1105
        %v1168 = vadd.s32 %v1152, %v1105
        %v1169 = vadd.s32 %v1153, %v1105
        %v1170 = vadd.s32 %v1154, %v1105
        %v1171 = vadd.s32 %v1155, %v1105
        %v1172 = vadd.s32 %v1156, %v1105
        %v1173 = vadd.s32 %v1157, %v1105
        %v1174 = vadd.s32 %v1158, %v1105
        %v1175 = vadd.s32 %v1159, %v1105
        %v1176 = vadd.s32 %v1160, %v1105
        %v1177 = vadd.s32 %v1161, %v1105
        %v1178 = vadd.s32 %v1162, %v1105
        %v1179 = vrot.slane %v1164, 7
        %v1180 = vsel %vm1122, %v1179, %v1163
        %v1181 = vrot.slane %v1165, 6
        %v1182 = vsel %vm1124, %v1181, %v1180
        %v1183 = vrot.slane %v1166, 5
        %v1184 = vsel %vm1126, %v1183, %v1182
        %v1185 = vrot.slane %v1167, 4
        %v1186 = vsel %vm1128, %v1185, %v1184
        %v1187 = vrot.slane %v1168, 3
        %v1188 = vsel %vm1130, %v1187, %v1186
        %v1189 = vrot.slane %v1169, 2
        %v1190 = vsel %vm1132, %v1189, %v1188
        %v1191 = vrot.slane %v1170, 1
        %v1192 = vsel %vm1134, %v1191, %v1190
        %v1193 = vrot.slane %v1172, 7
        %v1194 = vsel %vm1122, %v1193, %v1171
        %v1195 = vrot.slane %v1173, 6
        %v1196 = vsel %vm1124, %v1195, %v1194
        %v1197 = vrot.slane %v1174, 5
        %v1198 = vsel %vm1126, %v1197, %v1196
        %v1199 = vrot.slane %v1175, 4
        %v1200 = vsel %vm1128, %v1199, %v1198
        %v1201 = vrot.slane %v1176, 3
        %v1202 = vsel %vm1130, %v1201, %v1200
        %v1203 = vrot.slane %v1177, 2
        %v1204 = vsel %vm1132, %v1203, %v1202
        %v1205 = vrot.slane %v1178, 1
        %v1206 = vsel %vm1134, %v1205, %v1204
        %1207 = vst.msk [vmem:[%s290] sm:$0xff] %vm556, %v1192
        %1208 = vst.msk [vmem:[%s290 + $0x8] sm:$0xff] %vm556, %v1206
        %s1209 = sand.u32 %s143, 1
        %s1210 = scalar_lea.sflag [#allocation3], %s1209
        %s1211 = sand.u32 %s143, 1
        %s1212 = smul.addr %s1211, 32
        %s1213 = scalar_lea.vmem [#allocation2], %s1212
        %s1214 = sand.u32 %s25, 1
        %s1215 = scalar_lea.sflag [#allocation5], %s1214
        %s1216 = sand.u32 %s169, 1
        %s1217 = smul.addr %s1216, 16
        %s1218 = scalar_lea.vmem [#allocation4], %s1217
        %s1219 = sand.u32 %s25, 1
        %s1220 = scalar_lea.sflag [#allocation5], %s1219
        %s1221 = sand.u32 %s195, 1
        %s1222 = smul.addr %s1221, 16
        %s1223 = scalar_lea.vmem [#allocation6], %s1222
        // Predicated region
        $region41: #{tpu_custom_call.1} parent=39 // pred_check
          %p1224 = pneg %p153
        $region42: #{tpu_custom_call.1} parent=39 // pred_check_branch
          %1226 = sbr.rel (%p1224) target = $region44
        $region43: #{tpu_custom_call.1} parent=39 // pred_region
          %s1228 = ssub.s32 512, 512
          %1229 = vsyncadd %s1210, %s1228
          %s1230 = smul.addr %s25, 64
          %s1231 = scalar_lea.hbm %s5, %s1230
          %s1232 = sshll.u32 %s1213, 4
          %s1233 = int_to_ptr.vmem [resolvable:$true] %s1232
          %1238 = dma.vmem_to_hbm [thread:$0]  %s1233, 512, %s1231, %s1210, 64, 128, 4
        $region44: #{tpu_custom_call.1} parent=39 // pred_fallthru
          _
        // Predicated region
        $region45: #{tpu_custom_call.1} parent=39 // pred_check
          %p1239 = pneg %p179
        $region46: #{tpu_custom_call.1} parent=39 // pred_check_branch
          %1241 = sbr.rel (%p1239) target = $region48
        $region47: #{tpu_custom_call.1} parent=39 // pred_region
          %s1242 = smul.u32 2, %s25
          %s1244 = ssub.s32 256, 256
          %1245 = vsyncadd %s1215, %s1244
          %s1246 = smul.addr %s1242, 128
          %s1247 = scalar_lea.hbm %s6, %s1246
          %s1248 = sshll.u32 %s1218, 4
          %s1249 = int_to_ptr.vmem [resolvable:$true] %s1248
          %1254 = dma.vmem_to_hbm [thread:$0]  %s1249, 256, %s1247, %s1215, 128, 128, 8
        $region48: #{tpu_custom_call.1} parent=39 // pred_fallthru
          _
        // Predicated region
        $region49: #{tpu_custom_call.1} parent=39 // pred_check
          %p1255 = pneg %p205
        $region50: #{tpu_custom_call.1} parent=39 // pred_check_branch
          %1257 = sbr.rel (%p1255) target = $region52
        $region51: #{tpu_custom_call.1} parent=39 // pred_region
          %s1258 = smul.u32 2, %s25
          %s1260 = ssub.s32 256, 256
          %1261 = vsyncadd %s1220, %s1260
          %s1262 = smul.addr %s1258, 128
          %s1263 = scalar_lea.hbm %s7, %s1262
          %s1264 = sshll.u32 %s1223, 4
          %s1265 = int_to_ptr.vmem [resolvable:$true] %s1264
          %1270 = dma.vmem_to_hbm [thread:$0]  %s1265, 256, %s1263, %s1220, 128, 128, 8
        $region52: #{tpu_custom_call.1} parent=39 // pred_fallthru
          _
      $region40: #{tpu_custom_call.1} parent=5 // pred_fallthru
        _
      %p1271 = scmp.le.s32.totalorder 2, %s20
      // Predicated region
      $region53: #{tpu_custom_call.1} parent=5 // pred_check
        %p1272 = pneg %p1271
      $region54: #{tpu_custom_call.1} parent=5 // pred_check_branch
        %1274 = sbr.rel (%p1272) target = $region56
      $region55: #{tpu_custom_call.1} parent=5 // pred_region
        %s1275 = ssub.s32 %s20, 2
        // Predicated region
        $region57: #{tpu_custom_call.1} parent=55 // pred_check
          %p1276 = pneg %p159
        $region58: #{tpu_custom_call.1} parent=55 // pred_check_branch
          %1278 = sbr.rel (%p1276) target = $region60
        $region59: #{tpu_custom_call.1} parent=55 // pred_region
          %s1279 = sand.u32 %s144, 1
          %s1280 = scalar_lea.sflag [#allocation3], %s1279
          %s1281 = sand.u32 %s144, 1
          %s1282 = smul.addr %s1281, 32
          %s1283 = scalar_lea.vmem [#allocation2], %s1282
          %1284 = dma.done %s1280, 512
        $region60: #{tpu_custom_call.1} parent=55 // pred_fallthru
          _
        // Predicated region
        $region61: #{tpu_custom_call.1} parent=55 // pred_check
          %p1285 = pneg %p185
        $region62: #{tpu_custom_call.1} parent=55 // pred_check_branch
          %1287 = sbr.rel (%p1285) target = $region64
        $region63: #{tpu_custom_call.1} parent=55 // pred_region
          %s1288 = sand.u32 %s26, 1
          %s1289 = scalar_lea.sflag [#allocation5], %s1288
          %s1290 = sand.u32 %s170, 1
          %s1291 = smul.addr %s1290, 16
          %s1292 = scalar_lea.vmem [#allocation4], %s1291
          %1293 = dma.done %s1289, 256
        $region64: #{tpu_custom_call.1} parent=55 // pred_fallthru
          _
        // Predicated region
        $region65: #{tpu_custom_call.1} parent=55 // pred_check
          %p1294 = pneg %p211
        $region66: #{tpu_custom_call.1} parent=55 // pred_check_branch
          %1296 = sbr.rel (%p1294) target = $region68
        $region67: #{tpu_custom_call.1} parent=55 // pred_region
          %s1297 = sand.u32 %s26, 1
          %s1298 = scalar_lea.sflag [#allocation5], %s1297
          %s1299 = sand.u32 %s196, 1
          %s1300 = smul.addr %s1299, 16
          %s1301 = scalar_lea.vmem [#allocation6], %s1300
          %1302 = dma.done %s1298, 256
        $region68: #{tpu_custom_call.1} parent=55 // pred_fallthru
          _
      $region56: #{tpu_custom_call.1} parent=5 // pred_fallthru
        _
    $region6: #{tpu_custom_call.1} parent=1 // loop_footer
      %s24 = sadd.s32 1, %s20
    $region7: #{tpu_custom_call.1} parent=1 // loop_footer_branch
      %19 = sbr.rel target = $region3
    $region8: #{tpu_custom_call.1} parent=1 // loop_exit
      _
    %1303 = vsyncpa [#allocation3], 1
    %s1304 = scalar_lea.sflag [#allocation3], 1
    %1305 = vsyncpa %s1304, 1
    %1306 = vsyncpa [#allocation5], 1
    %s1307 = scalar_lea.sflag [#allocation5], 1
    %1308 = vsyncpa %s1307, 1

</llo_original>
